<compile_context>
chip_gen: v7x
topology: tpu7x:2x2x1
jax: 0.10.0
libtpu: 0.0.40
codegen_flags: <defaults>
</compile_context>

<pallas_src>
import jax
import jax.numpy as jnp
import numpy as np
from jax.experimental import pallas as pl
from jax.experimental.pallas import tpu as pltpu


def _round_up(n, m):
    return ((n + m - 1) // m) * m


def _sigmoid(z):
    # Same formula in kernel and reference so they can be compared tightly.
    return 1.0 / (1.0 + jnp.exp(-z))


def _tpu_generation():
    try:
        kind = jax.devices()[0].device_kind.lower()
    except Exception:
        return "unknown"
    if "v7" in kind:
        return "v7x"
    if "v6" in kind:
        return "v6e"
    if "v5" in kind:
        return "v5e"
    return "unknown"


# generation -> (default batch tile, scoped-VMEM cap in bytes, TensorCores per chip)
_GEN_CONFIG = {
    "v5e":     (512, 100 * 1024 * 1024, 1),
    "v6e":     (512, 100 * 1024 * 1024, 1),
    "v7x":     (256,  48 * 1024 * 1024, 2),
    "unknown": (512,  64 * 1024 * 1024, 1),
}


# --------------------------------------------------------------------------- kernel
def autoencoder_kernel(x_ref, wgT_ref, bg_ref, whT_ref, bh_ref, out_ref, hidden_ref):
    """Computes one (tb, tn) output tile.

    Grid = (batch_tiles, q_tiles); q axis is innermost ("arbitrary").
      x_ref:      (tb, Qp)  input tile (compute dtype), constant across the q axis
      wgT_ref:    (Qp, Kp)  g.weight^T, VMEM resident across the whole grid
      bg_ref:     (1,  Kp)  g.bias (f32)
      whT_ref:    (Kp, tn)  h.weight^T column tile
      bh_ref:     (1,  tn)  h.bias tile (f32)
      out_ref:    (tb, tn)  output tile (out dtype)
      hidden_ref: (tb, Kp)  VMEM scratch holding hidden acts of the current batch tile
    """
    @pl.when(pl.program_id(1) == 0)
    def _():
        # hidden = sigmoid(x @ Wg^T + bg): MXU matmul with f32 accumulation,
        # f32 bias + sigmoid epilogue (VPU/EUP), computed once per batch tile.
        z1 = jnp.dot(x_ref[...], wgT_ref[...],
                     preferred_element_type=jnp.float32) + bg_ref[...]
        hidden_ref[...] = _sigmoid(z1).astype(hidden_ref.dtype)

    # out[:, q-tile] = sigmoid(hidden @ Wh^T[:, q-tile] + bh[q-tile])
    z2 = jnp.dot(hidden_ref[...], whT_ref[...],
                 preferred_element_type=jnp.float32) + bh_ref[...]
    out_ref[...] = _sigmoid(z2).astype(out_ref.dtype)


# --------------------------------------------------------------------------- wrapper
def _pad2d(a, rows, cols):
    r, c = a.shape
    if r == rows and c == cols:
        return a
    return jnp.pad(a, ((0, rows - r), (0, cols - c)))


def prepare_params(g_weight, g_bias, h_weight, h_bias, *,
                   compute_dtype=jnp.bfloat16, block_q=2048):
    """One-time layout prep (do NOT call per forward): transpose to MXU-native
    (in_features, out_features), cast to the MXU compute dtype, zero-pad Q/K to
    multiples of 128 (and Q to a multiple of the q tile when Q is very large)."""
    K, Q = g_weight.shape                       # PyTorch Linear layout: (out, in)
    assert h_weight.shape == (Q, K)
    assert g_bias.shape == (K,) and h_bias.shape == (Q,)

    kp = _round_up(K, 128)
    qp = _round_up(Q, 128)
    block_q = max(256, (block_q // 256) * 256)  # 256-wide MXU N tiles
    if qp > block_q:
        tn = block_q
        qp = _round_up(Q, tn)
    else:
        tn = qp

    wgT = _pad2d(g_weight.T.astype(compute_dtype), qp, kp)          # (Qp, Kp)
    whT = _pad2d(h_weight.T.astype(compute_dtype), kp, qp)          # (Kp, Qp)
    bg = _pad2d(g_bias.astype(jnp.float32).reshape(1, K), 1, kp)    # (1, Kp)
    bh = _pad2d(h_bias.astype(jnp.float32).reshape(1, Q), 1, qp)    # (1, Qp)

    return {"wgT": wgT, "bg": bg, "whT": whT, "bh": bh,
            "num_question": Q, "k": K, "q_pad": qp, "k_pad": kp,
            "block_q": tn, "compute_dtype": compute_dtype}


def autoencoder_forward(x, params, *, out_dtype=jnp.bfloat16, block_batch=None,
                        interpret=False):
    """Forward pass. x: (B, num_question) -> (B, num_question) in out_dtype."""
    Q = params["num_question"]
    qp, kp, tn = params["q_pad"], params["k_pad"], params["block_q"]
    cdt = params["compute_dtype"]
    B = x.shape[0]
    assert x.shape == (B, Q)

    gen = _tpu_generation()
    default_bb, vmem_cap, num_cores = _GEN_CONFIG[gen]
    if block_batch is None:
        block_batch = default_bb

    # Batch tile: multiple of 16 rows (bf16 packs 16 sublanes per vreg).
    row_align = 16 if np.dtype(cdt).itemsize < 4 else 8
    tb = min(block_batch, _round_up(B, row_align))
    # On multi-TensorCore chips (v7x) make sure the "parallel" batch axis has at
    # least num_cores tiles so the second core is not idle.
    if num_cores > 1:
        while _round_up(B, tb) // tb < num_cores and tb > row_align:
            tb = _round_up(tb // 2, row_align)
    padded_b = _round_up(B, tb)

    xq = x.astype(cdt)
    if padded_b != B or qp != Q:
        xq = jnp.pad(xq, ((0, padded_b - B), (0, qp - Q)))

    q_tiles = qp // tn
    grid = (padded_b // tb, q_tiles)

    # Explicit scoped-VMEM budget sized from the actual tiles (+ headroom), capped
    # per generation (v7x has only 64 MiB physical VMEM per TensorCore).
    x_b = np.dtype(cdt).itemsize
    o_b = np.dtype(out_dtype).itemsize
    vmem_needed = (
        2 * tb * qp * x_b            # x tile, double-buffered
        + 2 * tb * tn * o_b          # out tile, double-buffered
        + 1 * qp * kp * x_b          # g.weight^T (single-buffered, resident)
        + 2 * kp * tn * x_b          # h.weight^T column tile
        + 2 * (kp + tn) * 4          # biases
        + tb * kp * x_b              # hidden scratch
        + 4 * tb * max(kp, tn) * 4   # f32 intermediates / spill headroom
    )
    vmem_limit = int(min(vmem_cap, max(vmem_needed + (8 << 20), 32 << 20)))

    def build(single_buffer_weights):
        resident = {"pipeline_mode": pl.Buffered(1)} if single_buffer_weights else {}
        # h.weight^T / h.bias tiles are only grid-constant when there is one q tile.
        whT_kw = resident if q_tiles == 1 else {}
        in_specs = [
            pl.BlockSpec((tb, qp), lambda i, n: (i, 0)),             # x: per batch tile
            pl.BlockSpec((qp, kp), lambda i, n: (0, 0), **resident), # g.weight^T
            pl.BlockSpec((1, kp), lambda i, n: (0, 0), **resident),  # g.bias
            pl.BlockSpec((kp, tn), lambda i, n: (0, n), **whT_kw),   # h.weight^T tile
            pl.BlockSpec((1, tn), lambda i, n: (0, n), **whT_kw),    # h.bias tile
        ]
        out_specs = pl.BlockSpec((tb, tn), lambda i, n: (i, n))
        return pl.pallas_call(
            autoencoder_kernel,
            out_shape=jax.ShapeDtypeStruct((padded_b, qp), out_dtype),
            grid=grid,
            in_specs=in_specs,
            out_specs=out_specs,
            scratch_shapes=[pltpu.VMEM((tb, kp), cdt)],
            compiler_params=pltpu.CompilerParams(
                dimension_semantics=("parallel", "arbitrary"),
                vmem_limit_bytes=vmem_limit,
            ),
            interpret=interpret,
        )

    args = (xq, params["wgT"], params["bg"], params["whT"], params["bh"])
    try:
        out = jax.block_until_ready(build(True)(*args))
    except Exception:
        # pipeline_mode=pl.Buffered(1) unsupported on this jax version: fall back to
        # default double-buffering (identical results, slightly more VMEM).
        out = jax.block_until_ready(build(False)(*args))

    return out[:B, :Q]


# --------------------------------------------------------------------------- reference / demo
def _init_linear(key, out_features, in_features):
    """PyTorch nn.Linear default init: U(-1/sqrt(fan_in), 1/sqrt(fan_in))."""
    kw, kb = jax.random.split(key)
    bound = 1.0 / jnp.sqrt(jnp.float32(in_features))
    w = jax.random.uniform(kw, (out_features, in_features), jnp.float32,
                           minval=-bound, maxval=bound)
    b = jax.random.uniform(kb, (out_features,), jnp.float32,
                           minval=-bound, maxval=bound)
    return w, b


def _reference(x, g_weight, g_bias, h_weight, h_bias, compute_dtype):
    """Pure-JAX reference using the same compute-dtype casts as the kernel."""
    xc = x.astype(compute_dtype)
    z1 = jnp.dot(xc, g_weight.T.astype(compute_dtype),
                 preferred_element_type=jnp.float32) + g_bias
    hidden = _sigmoid(z1)
    z2 = jnp.dot(hidden.astype(compute_dtype), h_weight.T.astype(compute_dtype),
                 preferred_element_type=jnp.float32) + h_bias
    return _sigmoid(z2)


# TODO(synk): get_weight_norm() is a training-time regularizer (sum of squared
# Frobenius norms) and is intentionally left to plain JAX, not a Pallas kernel.

if __name__ == "__main__":
    # Small shapes consistent with the module; Q/K deliberately NOT 128-aligned
    # to exercise the padding path (k=100 is the module default).
    batch, num_question, k = 8, 250, 100

    key = jax.random.PRNGKey(0)
    k_x, k_g, k_h = jax.random.split(key, 3)

    x = jax.random.uniform(k_x, (batch, num_question), jnp.float32)
    g_weight, g_bias = _init_linear(k_g, k, num_question)   # g: Linear(Q -> K)
    h_weight, h_bias = _init_linear(k_h, num_question, k)   # h: Linear(K -> Q)

    # One-time layout prep (transpose + cast + pad) — hoisted out of the forward path.
    params = prepare_params(g_weight, g_bias, h_weight, h_bias,
                            compute_dtype=jnp.bfloat16)

    ref_f32 = _reference(x, g_weight, g_bias, h_weight, h_bias, jnp.float32)
    ref_bf16 = _reference(x, g_weight, g_bias, h_weight, h_bias, jnp.bfloat16)

    # Default path: bf16 MXU operands, f32 accumulation/epilogue, bf16 output.
    out_bf16 = autoencoder_forward(x, params, out_dtype=jnp.bfloat16)
    assert out_bf16.shape == (batch, num_question)
    assert out_bf16.dtype == jnp.bfloat16
    assert jnp.allclose(out_bf16.astype(jnp.float32), ref_bf16, atol=8e-3)
    assert jnp.allclose(out_bf16.astype(jnp.float32), ref_f32, atol=2e-2)

    # f32 output path (same bf16 MXU operands, exact f32 epilogue kept on write-out).
    out_f32 = autoencoder_forward(x, params, out_dtype=jnp.float32)
    assert out_f32.shape == (batch, num_question)
    assert out_f32.dtype == jnp.float32
    assert jnp.allclose(out_f32, ref_bf16, atol=1e-3)
    assert jnp.allclose(out_f32, ref_f32, atol=2e-2)

    print("KERNEL_OK")
</pallas_src>

<mosaic_0001>
module attributes {stable_mosaic.version = 11 : i64} {
  func.func @autoencoder_kernel(%arg0: i32, %arg1: i32, %arg2: memref<16x256xbf16, #tpu.memory_space<vmem>>, %arg3: memref<256x128xbf16, #tpu.memory_space<vmem>>, %arg4: memref<1x128xf32, #tpu.memory_space<vmem>>, %arg5: memref<128x256xbf16, #tpu.memory_space<vmem>>, %arg6: memref<1x256xf32, #tpu.memory_space<vmem>>, %arg7: memref<16x256xbf16, #tpu.memory_space<vmem>>, %arg8: memref<16x128xbf16, #tpu.memory_space<vmem>>) attributes {dimension_semantics = [#tpu.dimension_semantics<parallel>, #tpu.dimension_semantics<arbitrary>], iteration_bounds = array<i64: 1, 1>, scalar_prefetch = 0 : i64, scratch_operands = 1 : i64, tpu.core_type = #tpu.core_type<tc>, window_params = [{transform_indices = @transform_0, window_bounds = array<i64: 16, 256>}, {pipeline_mode = #tpu.pipeline_mode<synchronous>, transform_indices = @transform_1, window_bounds = array<i64: 256, 128>}, {pipeline_mode = #tpu.pipeline_mode<synchronous>, transform_indices = @transform_2, window_bounds = array<i64: 1, 128>}, {pipeline_mode = #tpu.pipeline_mode<synchronous>, transform_indices = @transform_3, window_bounds = array<i64: 128, 256>}, {pipeline_mode = #tpu.pipeline_mode<synchronous>, transform_indices = @transform_4, window_bounds = array<i64: 1, 256>}, {transform_indices = @transform_5, window_bounds = array<i64: 16, 256>}]} {
    %c0_i32 = arith.constant 0 : i32
    %0 = arith.cmpi eq, %arg1, %c0_i32 : i32
    %1 = arith.extui %0 : i1 to i32
    %c0_i32_0 = arith.constant 0 : i32
    %2 = arith.cmpi ne, %1, %c0_i32_0 : i32
    scf.if %2 {
      %c0_11 = arith.constant 0 : index
      %c0_12 = arith.constant 0 : index
      %18 = vector.load %arg2[%c0_11, %c0_12] : memref<16x256xbf16, #tpu.memory_space<vmem>>, vector<16x256xbf16>
      %c0_13 = arith.constant 0 : index
      %c0_14 = arith.constant 0 : index
      %19 = vector.load %arg3[%c0_13, %c0_14] : memref<256x128xbf16, #tpu.memory_space<vmem>>, vector<256x128xbf16>
      %cst_15 = arith.constant dense<0.000000e+00> : vector<16x128xf32>
      %20 = tpu.matmul %18, %19, %cst_15 {dimension_numbers = #tpu.dot_dimension_numbers<[1], [0], [0], [1], [0, 0, 1, 1], [], []>} : vector<16x256xbf16>, vector<256x128xbf16>, vector<16x128xf32> -> vector<16x128xf32>
      %c0_16 = arith.constant 0 : index
      %c0_17 = arith.constant 0 : index
      %21 = vector.load %arg4[%c0_16, %c0_17] : memref<1x128xf32, #tpu.memory_space<vmem>>, vector<1x128xf32>
      %22 = vector.broadcast %21 : vector<1x128xf32> to vector<16x128xf32>
      %23 = arith.addf %20, %22 : vector<16x128xf32>
      %cst_18 = arith.constant 0.000000e+00 : f32
      %24 = vector.broadcast %cst_18 : f32 to vector<16x128xf32>
      %25 = arith.subf %24, %23 : vector<16x128xf32>
      %26 = math.exp %25 : vector<16x128xf32>
      %cst_19 = arith.constant 1.000000e+00 : f32
      %27 = vector.broadcast %cst_19 : f32 to vector<16x128xf32>
      %28 = arith.addf %27, %26 : vector<16x128xf32>
      %cst_20 = arith.constant 1.000000e+00 : f32
      %29 = vector.broadcast %cst_20 : f32 to vector<16x128xf32>
      %30 = arith.divf %29, %28 : vector<16x128xf32>
      %31 = arith.truncf %30 : vector<16x128xf32> to vector<16x128xbf16>
      %c0_21 = arith.constant 0 : index
      %c0_22 = arith.constant 0 : index
      %32 = vector.load %arg8[%c0_21, %c0_22] : memref<16x128xbf16, #tpu.memory_space<vmem>>, vector<16x128xbf16>
      tpu.vector_store %arg8[%c0_21, %c0_22], %31 {strides = array<i32>} : memref<16x128xbf16, #tpu.memory_space<vmem>>, vector<16x128xbf16>,
    } else {
    }
    %c0 = arith.constant 0 : index
    %c0_1 = arith.constant 0 : index
    %3 = vector.load %arg8[%c0, %c0_1] : memref<16x128xbf16, #tpu.memory_space<vmem>>, vector<16x128xbf16>
    %c0_2 = arith.constant 0 : index
    %c0_3 = arith.constant 0 : index
    %4 = vector.load %arg5[%c0_2, %c0_3] : memref<128x256xbf16, #tpu.memory_space<vmem>>, vector<128x256xbf16>
    %cst = arith.constant dense<0.000000e+00> : vector<16x256xf32>
    %5 = tpu.matmul %3, %4, %cst {dimension_numbers = #tpu.dot_dimension_numbers<[1], [0], [0], [1], [0, 0, 1, 1], [], []>} : vector<16x128xbf16>, vector<128x256xbf16>, vector<16x256xf32> -> vector<16x256xf32>
    %c0_4 = arith.constant 0 : index
    %c0_5 = arith.constant 0 : index
    %6 = vector.load %arg6[%c0_4, %c0_5] : memref<1x256xf32, #tpu.memory_space<vmem>>, vector<1x256xf32>
    %7 = vector.broadcast %6 : vector<1x256xf32> to vector<16x256xf32>
    %8 = arith.addf %5, %7 : vector<16x256xf32>
    %cst_6 = arith.constant 0.000000e+00 : f32
    %9 = vector.broadcast %cst_6 : f32 to vector<16x256xf32>
    %10 = arith.subf %9, %8 : vector<16x256xf32>
    %11 = math.exp %10 : vector<16x256xf32>
    %cst_7 = arith.constant 1.000000e+00 : f32
    %12 = vector.broadcast %cst_7 : f32 to vector<16x256xf32>
    %13 = arith.addf %12, %11 : vector<16x256xf32>
    %cst_8 = arith.constant 1.000000e+00 : f32
    %14 = vector.broadcast %cst_8 : f32 to vector<16x256xf32>
    %15 = arith.divf %14, %13 : vector<16x256xf32>
    %16 = arith.truncf %15 : vector<16x256xf32> to vector<16x256xbf16>
    %c0_9 = arith.constant 0 : index
    %c0_10 = arith.constant 0 : index
    %17 = vector.load %arg7[%c0_9, %c0_10] : memref<16x256xbf16, #tpu.memory_space<vmem>>, vector<16x256xbf16>
    tpu.vector_store %arg7[%c0_9, %c0_10], %16 {strides = array<i32>} : memref<16x256xbf16, #tpu.memory_space<vmem>>, vector<16x256xbf16>,
    return
  }
  func.func @transform_0(%arg0: i32, %arg1: i32) -> (i32, i32) {
    %c0_i32 = arith.constant 0 : i32
    %c0_i32_0 = arith.constant 0 : i32
    return %arg0, %c0_i32 : i32, i32
  }
  func.func @transform_1(%arg0: i32, %arg1: i32) -> (i32, i32) {
    %c0_i32 = arith.constant 0 : i32
    %c0_i32_0 = arith.constant 0 : i32
    %c0_i32_1 = arith.constant 0 : i32
    return %c0_i32, %c0_i32_0 : i32, i32
  }
  func.func @transform_2(%arg0: i32, %arg1: i32) -> (i32, i32) {
    %c0_i32 = arith.constant 0 : i32
    %c0_i32_0 = arith.constant 0 : i32
    %c0_i32_1 = arith.constant 0 : i32
    return %c0_i32, %c0_i32_0 : i32, i32
  }
  func.func @transform_3(%arg0: i32, %arg1: i32) -> (i32, i32) {
    %c0_i32 = arith.constant 0 : i32
    %c0_i32_0 = arith.constant 0 : i32
    return %c0_i32, %arg1 : i32, i32
  }
  func.func @transform_4(%arg0: i32, %arg1: i32) -> (i32, i32) {
    %c0_i32 = arith.constant 0 : i32
    %c0_i32_0 = arith.constant 0 : i32
    return %c0_i32, %arg1 : i32, i32
  }
  func.func @transform_5(%arg0: i32, %arg1: i32) -> (i32, i32) {
    %c0_i32 = arith.constant 0 : i32
    return %arg0, %arg1 : i32, i32
  }
}

module attributes {stable_mosaic.version = 11 : i64} {
  func.func @autoencoder_kernel(%arg0: i32, %arg1: i32, %arg2: memref<16x256xbf16, #tpu.memory_space<vmem>>, %arg3: memref<256x128xbf16, #tpu.memory_space<vmem>>, %arg4: memref<1x128xf32, #tpu.memory_space<vmem>>, %arg5: memref<128x256xbf16, #tpu.memory_space<vmem>>, %arg6: memref<1x256xf32, #tpu.memory_space<vmem>>, %arg7: memref<16x256xbf16, #tpu.memory_space<vmem>>, %arg8: memref<16x128xbf16, #tpu.memory_space<vmem>>) attributes {dimension_semantics = [#tpu.dimension_semantics<parallel>, #tpu.dimension_semantics<arbitrary>], iteration_bounds = array<i64: 1, 1>, scalar_prefetch = 0 : i64, scratch_operands = 1 : i64, tpu.core_type = #tpu.core_type<tc>, window_params = [{transform_indices = @transform_0, window_bounds = array<i64: 16, 256>}, {pipeline_mode = #tpu.pipeline_mode<synchronous>, transform_indices = @transform_1, window_bounds = array<i64: 256, 128>}, {pipeline_mode = #tpu.pipeline_mode<synchronous>, transform_indices = @transform_2, window_bounds = array<i64: 1, 128>}, {transform_indices = @transform_3, window_bounds = array<i64: 128, 256>}, {transform_indices = @transform_4, window_bounds = array<i64: 1, 256>}, {transform_indices = @transform_5, window_bounds = array<i64: 16, 256>}]} {
    %c0_i32 = arith.constant 0 : i32
    %0 = arith.cmpi eq, %arg1, %c0_i32 : i32
    %1 = arith.extui %0 : i1 to i32
    %c0_i32_0 = arith.constant 0 : i32
    %2 = arith.cmpi ne, %1, %c0_i32_0 : i32
    scf.if %2 {
      %c0_11 = arith.constant 0 : index
      %c0_12 = arith.constant 0 : index
      %18 = vector.load %arg2[%c0_11, %c0_12] : memref<16x256xbf16, #tpu.memory_space<vmem>>, vector<16x256xbf16>
      %c0_13 = arith.constant 0 : index
      %c0_14 = arith.constant 0 : index
      %19 = vector.load %arg3[%c0_13, %c0_14] : memref<256x128xbf16, #tpu.memory_space<vmem>>, vector<256x128xbf16>
      %cst_15 = arith.constant dense<0.000000e+00> : vector<16x128xf32>
      %20 = tpu.matmul %18, %19, %cst_15 {dimension_numbers = #tpu.dot_dimension_numbers<[1], [0], [0], [1], [0, 0, 1, 1], [], []>} : vector<16x256xbf16>, vector<256x128xbf16>, vector<16x128xf32> -> vector<16x128xf32>
      %c0_16 = arith.constant 0 : index
      %c0_17 = arith.constant 0 : index
      %21 = vector.load %arg4[%c0_16, %c0_17] : memref<1x128xf32, #tpu.memory_space<vmem>>, vector<1x128xf32>
      %22 = vector.broadcast %21 : vector<1x128xf32> to vector<16x128xf32>
      %23 = arith.addf %20, %22 : vector<16x128xf32>
      %cst_18 = arith.constant 0.000000e+00 : f32
      %24 = vector.broadcast %cst_18 : f32 to vector<16x128xf32>
      %25 = arith.subf %24, %23 : vector<16x128xf32>
      %26 = math.exp %25 : vector<16x128xf32>
      %cst_19 = arith.constant 1.000000e+00 : f32
      %27 = vector.broadcast %cst_19 : f32 to vector<16x128xf32>
      %28 = arith.addf %27, %26 : vector<16x128xf32>
      %cst_20 = arith.constant 1.000000e+00 : f32
      %29 = vector.broadcast %cst_20 : f32 to vector<16x128xf32>
      %30 = arith.divf %29, %28 : vector<16x128xf32>
      %31 = arith.truncf %30 : vector<16x128xf32> to vector<16x128xbf16>
      %c0_21 = arith.constant 0 : index
      %c0_22 = arith.constant 0 : index
      %32 = vector.load %arg8[%c0_21, %c0_22] : memref<16x128xbf16, #tpu.memory_space<vmem>>, vector<16x128xbf16>
      tpu.vector_store %arg8[%c0_21, %c0_22], %31 {strides = array<i32>} : memref<16x128xbf16, #tpu.memory_space<vmem>>, vector<16x128xbf16>,
    } else {
    }
    %c0 = arith.constant 0 : index
    %c0_1 = arith.constant 0 : index
    %3 = vector.load %arg8[%c0, %c0_1] : memref<16x128xbf16, #tpu.memory_space<vmem>>, vector<16x128xbf16>
    %c0_2 = arith.constant 0 : index
    %c0_3 = arith.constant 0 : index
    %4 = vector.load %arg5[%c0_2, %c0_3] : memref<128x256xbf16, #tpu.memory_space<vmem>>, vector<128x256xbf16>
    %cst = arith.constant dense<0.000000e+00> : vector<16x256xf32>
    %5 = tpu.matmul %3, %4, %cst {dimension_numbers = #tpu.dot_dimension_numbers<[1], [0], [0], [1], [0, 0, 1, 1], [], []>} : vector<16x128xbf16>, vector<128x256xbf16>, vector<16x256xf32> -> vector<16x256xf32>
    %c0_4 = arith.constant 0 : index
    %c0_5 = arith.constant 0 : index
    %6 = vector.load %arg6[%c0_4, %c0_5] : memref<1x256xf32, #tpu.memory_space<vmem>>, vector<1x256xf32>
    %7 = vector.broadcast %6 : vector<1x256xf32> to vector<16x256xf32>
    %8 = arith.addf %5, %7 : vector<16x256xf32>
    %cst_6 = arith.constant 0.000000e+00 : f32
    %9 = vector.broadcast %cst_6 : f32 to vector<16x256xf32>
    %10 = arith.subf %9, %8 : vector<16x256xf32>
    %11 = math.exp %10 : vector<16x256xf32>
    %cst_7 = arith.constant 1.000000e+00 : f32
    %12 = vector.broadcast %cst_7 : f32 to vector<16x256xf32>
    %13 = arith.addf %12, %11 : vector<16x256xf32>
    %cst_8 = arith.constant 1.000000e+00 : f32
    %14 = vector.broadcast %cst_8 : f32 to vector<16x256xf32>
    %15 = arith.divf %14, %13 : vector<16x256xf32>
    %16 = arith.truncf %15 : vector<16x256xf32> to vector<16x256xbf16>
    %c0_9 = arith.constant 0 : index
    %c0_10 = arith.constant 0 : index
    %17 = vector.load %arg7[%c0_9, %c0_10] : memref<16x256xbf16, #tpu.memory_space<vmem>>, vector<16x256xbf16>
    tpu.vector_store %arg7[%c0_9, %c0_10], %16 {strides = array<i32>} : memref<16x256xbf16, #tpu.memory_space<vmem>>, vector<16x256xbf16>,
    return
  }
  func.func @transform_0(%arg0: i32, %arg1: i32) -> (i32, i32) {
    %c0_i32 = arith.constant 0 : i32
    %c0_i32_0 = arith.constant 0 : i32
    return %arg0, %c0_i32 : i32, i32
  }
  func.func @transform_1(%arg0: i32, %arg1: i32) -> (i32, i32) {
    %c0_i32 = arith.constant 0 : i32
    %c0_i32_0 = arith.constant 0 : i32
    %c0_i32_1 = arith.constant 0 : i32
    return %c0_i32, %c0_i32_0 : i32, i32
  }
  func.func @transform_2(%arg0: i32, %arg1: i32) -> (i32, i32) {
    %c0_i32 = arith.constant 0 : i32
    %c0_i32_0 = arith.constant 0 : i32
    %c0_i32_1 = arith.constant 0 : i32
    return %c0_i32, %c0_i32_0 : i32, i32
  }
  func.func @transform_3(%arg0: i32, %arg1: i32) -> (i32, i32) {
    %c0_i32 = arith.constant 0 : i32
    %c0_i32_0 = arith.constant 0 : i32
    return %c0_i32, %arg1 : i32, i32
  }
  func.func @transform_4(%arg0: i32, %arg1: i32) -> (i32, i32) {
    %c0_i32 = arith.constant 0 : i32
    %c0_i32_0 = arith.constant 0 : i32
    return %c0_i32, %arg1 : i32, i32
  }
  func.func @transform_5(%arg0: i32, %arg1: i32) -> (i32, i32) {
    %c0_i32 = arith.constant 0 : i32
    return %arg0, %arg1 : i32, i32
  }
}

</mosaic_0001>

<llo_original>
// kernel: tpu_custom_call.1
$region0: #{tpu_custom_call.1}
  #allocation0 [shape = 'u32[]', space=smem, size = 0x4, offset = 0x4, fixed_abs, tag = 'smem constant byte address 0x4 - core index']
  #allocation1 [shape = 'u32[144,128]{1,0:T(1,128)}', space=vmem, size = 0x12000, scoped, tag = 'internal scratch']
  #allocation2 [shape = 'bf16[16,128]{1,0:T(16,128)(2,1)}', space=vmem, size = 0x1000, scoped, tag = 'scratch operand']
  %s0 = inlined_call_operand.hbm [shape: bf16[16,256], index: 0, kind: input, shape index: {}]
  %s1 = inlined_call_operand.hbm [shape: bf16[256,128], index: 1, kind: input, shape index: {}]
  %s2 = inlined_call_operand.vmem [shape: f32[1,128], index: 2, kind: input, shape index: {}]
  %s3 = inlined_call_operand.hbm [shape: bf16[128,256], index: 3, kind: input, shape index: {}]
  %s4 = inlined_call_operand.vmem [shape: f32[1,256], index: 4, kind: input, shape index: {}]
  %s5 = inlined_call_operand.hbm [shape: bf16[16,256], index: 5, kind: output, shape index: {}]
  %s6 = sld [smem:[#allocation0]]
  $region46: #{tpu_custom_call.1} parent=0
    _
  %s8 = ssub.s32 1, %s6
  %s9 = scalar_select 0, %s8, %s6
  $region1: #{tpu_custom_call.1} parent=0
    #allocation3 [shape = 'u8[8192]{0}', space=vmem, size = 0x2000, scoped, tag = 'input window, operand 0, single buffered']
    #allocation4 [shape = 's32[1]{0}', space=sflag, size = 0x4, scoped, tag = 'scoped memory for tpu_custom_call.1']
    #allocation5 [shape = 's32[1]{0}', space=sflag, size = 0x4, scoped, tag = 'scoped memory for tpu_custom_call.1']
    #allocation6 [shape = 'u8[65536]{0}', space=vmem, size = 0x10000, scoped, tag = 'input window, operand 1, single buffered']
    #allocation7 [shape = 's32[1]{0}', space=sflag, size = 0x4, scoped, tag = 'scoped memory for tpu_custom_call.1']
    #allocation8 [shape = 'u8[65536]{0}', space=vmem, size = 0x10000, scoped, tag = 'input window, operand 3, single buffered']
    #allocation9 [shape = 'u8[8192]{0}', space=vmem, size = 0x2000, scoped, tag = 'output window, operand 0, single buffered']
    %10 = vsyncpa [#allocation4], 0
    %11 = vsyncpa [#allocation7], 0
    %12 = vsyncpa [#allocation5], 0
    // Predicated region
    $region2: #{tpu_custom_call.1} parent=1 // pred_check
      _
    $region3: #{tpu_custom_call.1} parent=1 // pred_check_branch
      %14 = sbr.rel (0) target = $region5
    $region4: #{tpu_custom_call.1} parent=1 // pred_region
      %s16 = ssub.s32 256, 256
      %17 = vsyncadd [#allocation4], %s16
      %s18 = sshll.u32 [#allocation3], 4
      %s19 = int_to_ptr.vmem [resolvable:$true] %s18
      %24 = dma.hbm_to_vmem [thread:$0]  %s0, 256, %s19, [#allocation4], 128, 128, 8
    $region5: #{tpu_custom_call.1} parent=1 // pred_fallthru
      _
    // Predicated region
    $region6: #{tpu_custom_call.1} parent=1 // pred_check
      _
    $region7: #{tpu_custom_call.1} parent=1 // pred_check_branch
      %26 = sbr.rel (0) target = $region9
    $region8: #{tpu_custom_call.1} parent=1 // pred_region
      %s28 = ssub.s32 2048, 2048
      %29 = vsyncadd [#allocation7], %s28
      %s30 = sshll.u32 [#allocation6], 4
      %s31 = int_to_ptr.vmem [resolvable:$true] %s30
      %36 = dma.hbm_to_vmem [thread:$0]  %s1, 2048, %s31, [#allocation7], 64, 64, 4
    $region9: #{tpu_custom_call.1} parent=1 // pred_fallthru
      _
    // Predicated region
    $region10: #{tpu_custom_call.1} parent=1 // pred_check
      _
    $region11: #{tpu_custom_call.1} parent=1 // pred_check_branch
      %38 = sbr.rel (0) target = $region13
    $region12: #{tpu_custom_call.1} parent=1 // pred_region
      _
    $region13: #{tpu_custom_call.1} parent=1 // pred_fallthru
      _
    // Predicated region
    $region14: #{tpu_custom_call.1} parent=1 // pred_check
      _
    $region15: #{tpu_custom_call.1} parent=1 // pred_check_branch
      %40 = sbr.rel (0) target = $region17
    $region16: #{tpu_custom_call.1} parent=1 // pred_region
      %s42 = ssub.s32 2048, 2048
      %43 = vsyncadd [#allocation7], %s42
      %s44 = sshll.u32 [#allocation8], 4
      %s45 = int_to_ptr.vmem [resolvable:$true] %s44
      %50 = dma.hbm_to_vmem [thread:$0]  %s3, 2048, %s45, [#allocation7], 128, 128, 8
    $region17: #{tpu_custom_call.1} parent=1 // pred_fallthru
      _
    // Predicated region
    $region18: #{tpu_custom_call.1} parent=1 // pred_check
      _
    $region19: #{tpu_custom_call.1} parent=1 // pred_check_branch
      %52 = sbr.rel (0) target = $region21
    $region20: #{tpu_custom_call.1} parent=1 // pred_region
      _
    $region21: #{tpu_custom_call.1} parent=1 // pred_fallthru
      _
    // Predicated region
    $region22: #{tpu_custom_call.1} parent=1 // pred_check
      _
    $region23: #{tpu_custom_call.1} parent=1 // pred_check_branch
      %54 = sbr.rel (0) target = $region25
    $region24: #{tpu_custom_call.1} parent=1 // pred_region
      %55 = dma.done [#allocation4], 256
    $region25: #{tpu_custom_call.1} parent=1 // pred_fallthru
      _
    // Predicated region
    $region26: #{tpu_custom_call.1} parent=1 // pred_check
      _
    $region27: #{tpu_custom_call.1} parent=1 // pred_check_branch
      %57 = sbr.rel (0) target = $region29
    $region28: #{tpu_custom_call.1} parent=1 // pred_region
      %58 = dma.done [#allocation7], 2048
    $region29: #{tpu_custom_call.1} parent=1 // pred_fallthru
      _
    // Predicated region
    $region30: #{tpu_custom_call.1} parent=1 // pred_check
      _
    $region31: #{tpu_custom_call.1} parent=1 // pred_check_branch
      %60 = sbr.rel (0) target = $region33
    $region32: #{tpu_custom_call.1} parent=1 // pred_region
      %61 = dma.done [#allocation7], 2048
    $region33: #{tpu_custom_call.1} parent=1 // pred_fallthru
      _
    %p63 = scmp.eq.s32.totalorder 0, 0
    // Predicated region
    $region34: #{tpu_custom_call.1} parent=1 // pred_check
      %p64 = pneg %p63
    $region35: #{tpu_custom_call.1} parent=1 // pred_check_branch
      %66 = sbr.rel (%p64) target = $region37
    $region36: #{tpu_custom_call.1} parent=1 // pred_region
      %v67 = vld [vmem:[#allocation3] sm:$0xff]
      %v68 = vld [vmem:[#allocation3 + $0x8] sm:$0xff]
      %v69 = vld [vmem:[#allocation6] sm:$0xf]
      %v70 = vld [vmem:[#allocation6 + $0x4] sm:$0xf]
      %v71 = vld [vmem:[#allocation6 + $0x8] sm:$0xf]
      %v72 = vld [vmem:[#allocation6 + $0xc] sm:$0xf]
      %v73 = vld [vmem:[#allocation6 + $0x10] sm:$0xf]
      %v74 = vld [vmem:[#allocation6 + $0x14] sm:$0xf]
      %v75 = vld [vmem:[#allocation6 + $0x18] sm:$0xf]
      %v76 = vld [vmem:[#allocation6 + $0x1c] sm:$0xf]
      %v77 = vld [vmem:[#allocation6 + $0x20] sm:$0xf]
      %v78 = vld [vmem:[#allocation6 + $0x24] sm:$0xf]
      %v79 = vld [vmem:[#allocation6 + $0x28] sm:$0xf]
      %v80 = vld [vmem:[#allocation6 + $0x2c] sm:$0xf]
      %v81 = vld [vmem:[#allocation6 + $0x30] sm:$0xf]
      %v82 = vld [vmem:[#allocation6 + $0x34] sm:$0xf]
      %v83 = vld [vmem:[#allocation6 + $0x38] sm:$0xf]
      %v84 = vld [vmem:[#allocation6 + $0x3c] sm:$0xf]
      %v85 = vld [vmem:[#allocation6 + $0x40] sm:$0xf]
      %v86 = vld [vmem:[#allocation6 + $0x44] sm:$0xf]
      %v87 = vld [vmem:[#allocation6 + $0x48] sm:$0xf]
      %v88 = vld [vmem:[#allocation6 + $0x4c] sm:$0xf]
      %v89 = vld [vmem:[#allocation6 + $0x50] sm:$0xf]
      %v90 = vld [vmem:[#allocation6 + $0x54] sm:$0xf]
      %v91 = vld [vmem:[#allocation6 + $0x58] sm:$0xf]
      %v92 = vld [vmem:[#allocation6 + $0x5c] sm:$0xf]
      %v93 = vld [vmem:[#allocation6 + $0x60] sm:$0xf]
      %v94 = vld [vmem:[#allocation6 + $0x64] sm:$0xf]
      %v95 = vld [vmem:[#allocation6 + $0x68] sm:$0xf]
      %v96 = vld [vmem:[#allocation6 + $0x6c] sm:$0xf]
      %v97 = vld [vmem:[#allocation6 + $0x70] sm:$0xf]
      %v98 = vld [vmem:[#allocation6 + $0x74] sm:$0xf]
      %v99 = vld [vmem:[#allocation6 + $0x78] sm:$0xf]
      %v100 = vld [vmem:[#allocation6 + $0x7c] sm:$0xf]
      %v101 = vld [vmem:[%s2] sm:$0x1]
      %v103 = vlaneseq
      %v104 = vshrl.u32 %v103, 7
      %v105 = vsub.s32 0, %v104
      %v106 = vrot.slane %v101, %v105
      %v110 = vunpack.c.l.b16 %v67
      %v111 = vunpack.c.h.b16 %v67
      %v112 = vunpack.c.l.b16 %v68
      %v113 = vunpack.c.h.b16 %v68
      %v114 = vpack.c.b16 %v112, %v110
      %v115 = vpack.c.b16 %v113, %v111
      %v150 = vunpack.c.l.b16 %v69
      %v151 = vunpack.c.l.b16 %v70
      %v152 = vunpack.c.l.b16 %v71
      %v153 = vunpack.c.l.b16 %v72
      %v154 = vunpack.c.l.b16 %v73
      %v155 = vunpack.c.l.b16 %v74
      %v156 = vunpack.c.l.b16 %v75
      %v157 = vunpack.c.l.b16 %v76
      %v158 = vunpack.c.l.b16 %v77
      %v159 = vunpack.c.l.b16 %v78
      %v160 = vunpack.c.l.b16 %v79
      %v161 = vunpack.c.l.b16 %v80
      %v162 = vunpack.c.l.b16 %v81
      %v163 = vunpack.c.l.b16 %v82
      %v164 = vunpack.c.l.b16 %v83
      %v165 = vunpack.c.l.b16 %v84
      %v166 = vunpack.c.l.b16 %v85
      %v167 = vunpack.c.l.b16 %v86
      %v168 = vunpack.c.l.b16 %v87
      %v169 = vunpack.c.l.b16 %v88
      %v170 = vunpack.c.l.b16 %v89
      %v171 = vunpack.c.l.b16 %v90
      %v172 = vunpack.c.l.b16 %v91
      %v173 = vunpack.c.l.b16 %v92
      %v174 = vunpack.c.l.b16 %v93
      %v175 = vunpack.c.l.b16 %v94
      %v176 = vunpack.c.l.b16 %v95
      %v177 = vunpack.c.l.b16 %v96
      %v178 = vunpack.c.l.b16 %v97
      %v179 = vunpack.c.l.b16 %v98
      %v180 = vunpack.c.l.b16 %v99
      %v181 = vunpack.c.l.b16 %v100
      %v182 = vpack.c.b16 %v151, %v150
      %v183 = vpack.c.b16 %v153, %v152
      %v184 = vpack.c.b16 %v155, %v154
      %v185 = vpack.c.b16 %v157, %v156
      %v186 = vpack.c.b16 %v159, %v158
      %v187 = vpack.c.b16 %v161, %v160
      %v188 = vpack.c.b16 %v163, %v162
      %v189 = vpack.c.b16 %v165, %v164
      %v190 = vpack.c.b16 %v167, %v166
      %v191 = vpack.c.b16 %v169, %v168
      %v192 = vpack.c.b16 %v171, %v170
      %v193 = vpack.c.b16 %v173, %v172
      %v194 = vpack.c.b16 %v175, %v174
      %v195 = vpack.c.b16 %v177, %v176
      %v196 = vpack.c.b16 %v179, %v178
      %v197 = vpack.c.b16 %v181, %v180
      %214 = vmatprep.subr.bf16.mxu0 0
      %215 = vmatpush1.bf16.msra.mxu0 %v182
      %216 = vmatprep.subr.bf16.mxu0 0
      %217 = vmatpush1.bf16.msra.mxu0 %v183
      %218 = vmatprep.subr.bf16.mxu0 0
      %219 = vmatpush1.bf16.msra.mxu0 %v184
      %220 = vmatprep.subr.bf16.mxu0 0
      %221 = vmatpush1.bf16.msra.mxu0 %v185
      %222 = vmatprep.subr.bf16.mxu0 0
      %223 = vmatpush1.bf16.msra.mxu0 %v186
      %224 = vmatprep.subr.bf16.mxu0 0
      %225 = vmatpush1.bf16.msra.mxu0 %v187
      %226 = vmatprep.subr.bf16.mxu0 0
      %227 = vmatpush1.bf16.msra.mxu0 %v188
      %228 = vmatprep.subr.bf16.mxu0 0
      %229 = vmatpush1.bf16.msra.mxu0 %v189
      %230 = vmatprep.subr.bf16.mxu0 0
      %231 = vmatpush1.bf16.msra.mxu0 %v190
      %232 = vmatprep.subr.bf16.mxu0 0
      %233 = vmatpush1.bf16.msra.mxu0 %v191
      %234 = vmatprep.subr.bf16.mxu0 0
      %235 = vmatpush1.bf16.msra.mxu0 %v192
      %236 = vmatprep.subr.bf16.mxu0 0
      %237 = vmatpush1.bf16.msra.mxu0 %v193
      %238 = vmatprep.subr.bf16.mxu0 0
      %239 = vmatpush1.bf16.msra.mxu0 %v194
      %240 = vmatprep.subr.bf16.mxu0 0
      %241 = vmatpush1.bf16.msra.mxu0 %v195
      %242 = vmatprep.subr.bf16.mxu0 0
      %243 = vmatpush1.bf16.msra.mxu0 %v196
      %244 = vmatprep.subr.bf16.mxu0 0
      %245 = vmatpush1.bf16.msra.mxu0 %v197
      %246 = vmatprep.mubr.bf16.mxu0 %v115
      %247 = vmatmul.mubr.bf16.gmra.mrb[0].mxu0 %v114
      %v248 = vpop.f32.mrb[0].mxu0
      %v249 = vadd.f32 %v106, %v248
      %v250 = vpop.f32.mrb[0].mxu0
      %v251 = vpop.f32.mrb[0].mxu0
      %v252 = vadd.f32 %v106, %v251
      %v253 = vpop.f32.mrb[0].mxu0
      %254 = vdwg.mxu0
      %v255 = vsub.f32 0.0, %v249
      %v256 = vsub.f32 0.0, %v252
      %v257 = vmul.f32 %v255, 1.442695
      %v258 = vpow.pop %v257
      %v259 = vmul.f32 %v256, 1.442695
      %v260 = vpow.pop %v259
      %v261 = vadd.f32 %v258, 1.0
      %v262 = vadd.f32 %v260, 1.0
      %v263 = vrcp.pop %v261
      %v264 = vmul.f32 1.0, %v263
      %v265 = vrcp.pop %v262
      %v266 = vmul.f32 1.0, %v265
      %v267 = vpack.c.bf16 %v266, %v264
      %268 = vst [vmem:[#allocation2] sm:$0xff] %v267
    $region37: #{tpu_custom_call.1} parent=1 // pred_fallthru
      _
    %v269 = vld [vmem:[#allocation2] sm:$0xff]
    %v270 = vld [vmem:[#allocation8] sm:$0xff]
    %v271 = vld [vmem:[#allocation8 + $0x8] sm:$0xff]
    %v272 = vld [vmem:[#allocation8 + $0x10] sm:$0xff]
    %v273 = vld [vmem:[#allocation8 + $0x18] sm:$0xff]
    %v274 = vld [vmem:[#allocation8 + $0x20] sm:$0xff]
    %v275 = vld [vmem:[#allocation8 + $0x28] sm:$0xff]
    %v276 = vld [vmem:[#allocation8 + $0x30] sm:$0xff]
    %v277 = vld [vmem:[#allocation8 + $0x38] sm:$0xff]
    %v278 = vld [vmem:[#allocation8 + $0x40] sm:$0xff]
    %v279 = vld [vmem:[#allocation8 + $0x48] sm:$0xff]
    %v280 = vld [vmem:[#allocation8 + $0x50] sm:$0xff]
    %v281 = vld [vmem:[#allocation8 + $0x58] sm:$0xff]
    %v282 = vld [vmem:[#allocation8 + $0x60] sm:$0xff]
    %v283 = vld [vmem:[#allocation8 + $0x68] sm:$0xff]
    %v284 = vld [vmem:[#allocation8 + $0x70] sm:$0xff]
    %v285 = vld [vmem:[#allocation8 + $0x78] sm:$0xff]
    %v286 = vld [vmem:[%s4] sm:$0x3]
    %v288 = vlaneseq
    %v289 = vshrl.u32 %v288, 7
    %v290 = vsub.s32 0, %v289
    %v291 = vrot.slane %v286, %v290
    %v292 = vlaneseq
    %v293 = vshrl.u32 %v292, 7
    %v294 = vsub.s32 1, %v293
    %v295 = vrot.slane %v286, %v294
    %v314 = vunpack.c.l.b16 %v270
    %v315 = vunpack.c.h.b16 %v270
    %v316 = vunpack.c.l.b16 %v271
    %v317 = vunpack.c.h.b16 %v271
    %v318 = vunpack.c.l.b16 %v272
    %v319 = vunpack.c.h.b16 %v272
    %v320 = vunpack.c.l.b16 %v273
    %v321 = vunpack.c.h.b16 %v273
    %v322 = vunpack.c.l.b16 %v274
    %v323 = vunpack.c.h.b16 %v274
    %v324 = vunpack.c.l.b16 %v275
    %v325 = vunpack.c.h.b16 %v275
    %v326 = vunpack.c.l.b16 %v276
    %v327 = vunpack.c.h.b16 %v276
    %v328 = vunpack.c.l.b16 %v277
    %v329 = vunpack.c.h.b16 %v277
    %v330 = vunpack.c.l.b16 %v278
    %v331 = vunpack.c.h.b16 %v278
    %v332 = vunpack.c.l.b16 %v279
    %v333 = vunpack.c.h.b16 %v279
    %v334 = vunpack.c.l.b16 %v280
    %v335 = vunpack.c.h.b16 %v280
    %v336 = vunpack.c.l.b16 %v281
    %v337 = vunpack.c.h.b16 %v281
    %v338 = vunpack.c.l.b16 %v282
    %v339 = vunpack.c.h.b16 %v282
    %v340 = vunpack.c.l.b16 %v283
    %v341 = vunpack.c.h.b16 %v283
    %v342 = vunpack.c.l.b16 %v284
    %v343 = vunpack.c.h.b16 %v284
    %v344 = vunpack.c.l.b16 %v285
    %v345 = vunpack.c.h.b16 %v285
    %v346 = vpack.c.b16 %v316, %v314
    %v347 = vpack.c.b16 %v317, %v315
    %v348 = vpack.c.b16 %v320, %v318
    %v349 = vpack.c.b16 %v321, %v319
    %v350 = vpack.c.b16 %v324, %v322
    %v351 = vpack.c.b16 %v325, %v323
    %v352 = vpack.c.b16 %v328, %v326
    %v353 = vpack.c.b16 %v329, %v327
    %v354 = vpack.c.b16 %v332, %v330
    %v355 = vpack.c.b16 %v333, %v331
    %v356 = vpack.c.b16 %v336, %v334
    %v357 = vpack.c.b16 %v337, %v335
    %v358 = vpack.c.b16 %v340, %v338
    %v359 = vpack.c.b16 %v341, %v339
    %v360 = vpack.c.b16 %v344, %v342
    %v361 = vpack.c.b16 %v345, %v343
    %378 = vmatprep.subr.bf16.mxu0 %v347
    %379 = vmatpush1.bf16.msra.mxu0 %v346
    %380 = vmatprep.subr.bf16.mxu0 %v349
    %381 = vmatpush1.bf16.msra.mxu0 %v348
    %382 = vmatprep.subr.bf16.mxu0 %v351
    %383 = vmatpush1.bf16.msra.mxu0 %v350
    %384 = vmatprep.subr.bf16.mxu0 %v353
    %385 = vmatpush1.bf16.msra.mxu0 %v352
    %386 = vmatprep.subr.bf16.mxu0 %v355
    %387 = vmatpush1.bf16.msra.mxu0 %v354
    %388 = vmatprep.subr.bf16.mxu0 %v357
    %389 = vmatpush1.bf16.msra.mxu0 %v356
    %390 = vmatprep.subr.bf16.mxu0 %v359
    %391 = vmatpush1.bf16.msra.mxu0 %v358
    %392 = vmatprep.subr.bf16.mxu0 %v361
    %393 = vmatpush1.bf16.msra.mxu0 %v360
    %394 = vmatprep.subr.bf16.mxu0 0
    %395 = vmatpush1.bf16.msra.mxu0 0
    %396 = vmatprep.subr.bf16.mxu0 0
    %397 = vmatpush1.bf16.msra.mxu0 0
    %398 = vmatprep.subr.bf16.mxu0 0
    %399 = vmatpush1.bf16.msra.mxu0 0
    %400 = vmatprep.subr.bf16.mxu0 0
    %401 = vmatpush1.bf16.msra.mxu0 0
    %402 = vmatprep.subr.bf16.mxu0 0
    %403 = vmatpush1.bf16.msra.mxu0 0
    %404 = vmatprep.subr.bf16.mxu0 0
    %405 = vmatpush1.bf16.msra.mxu0 0
    %406 = vmatprep.subr.bf16.mxu0 0
    %407 = vmatpush1.bf16.msra.mxu0 0
    %408 = vmatprep.subr.bf16.mxu0 0
    %409 = vmatpush1.bf16.msra.mxu0 0
    %410 = vmatprep.mubr.bf16.mxu0 0
    %411 = vmatmul.mubr.bf16.gmra.mrb[0].mxu0 %v269
    %v412 = vpop.f32.mrb[0].mxu0
    %v413 = vadd.f32 %v291, %v412
    %v414 = vpop.f32.mrb[0].mxu0
    %v415 = vadd.f32 %v295, %v414
    %v416 = vpop.f32.mrb[0].mxu0
    %v417 = vadd.f32 %v291, %v416
    %v418 = vpop.f32.mrb[0].mxu0
    %v419 = vadd.f32 %v295, %v418
    %420 = vdwg.mxu0
    %v421 = vsub.f32 0.0, %v413
    %v422 = vsub.f32 0.0, %v415
    %v423 = vsub.f32 0.0, %v417
    %v424 = vsub.f32 0.0, %v419
    %v425 = vmul.f32 %v421, 1.442695
    %v426 = vpow.pop %v425
    %v427 = vmul.f32 %v422, 1.442695
    %v428 = vpow.pop %v427
    %v429 = vmul.f32 %v423, 1.442695
    %v430 = vpow.pop %v429
    %v431 = vmul.f32 %v424, 1.442695
    %v432 = vpow.pop %v431
    %v433 = vadd.f32 %v426, 1.0
    %v434 = vadd.f32 %v428, 1.0
    %v435 = vadd.f32 %v430, 1.0
    %v436 = vadd.f32 %v432, 1.0
    %v437 = vrcp.pop %v433
    %v438 = vmul.f32 1.0, %v437
    %v439 = vrcp.pop %v434
    %v440 = vmul.f32 1.0, %v439
    %v441 = vrcp.pop %v435
    %v442 = vmul.f32 1.0, %v441
    %v443 = vrcp.pop %v436
    %v444 = vmul.f32 1.0, %v443
    %v445 = vpack.c.bf16 %v442, %v438
    %v446 = vpack.c.bf16 %v444, %v440
    %v449 = vunpack.c.l.b16 %v445
    %v450 = vunpack.c.l.b16 %v446
    %v451 = vunpack.c.h.b16 %v445
    %v452 = vunpack.c.h.b16 %v446
    %v453 = vpack.c.b16 %v450, %v449
    %v454 = vpack.c.b16 %v452, %v451
    %457 = vst [vmem:[#allocation9] sm:$0xff] %v453
    %458 = vst [vmem:[#allocation9 + $0x8] sm:$0xff] %v454
    // Predicated region
    $region38: #{tpu_custom_call.1} parent=1 // pred_check
      _
    $region39: #{tpu_custom_call.1} parent=1 // pred_check_branch
      %460 = sbr.rel (0) target = $region41
    $region40: #{tpu_custom_call.1} parent=1 // pred_region
      %s462 = ssub.s32 256, 256
      %463 = vsyncadd [#allocation5], %s462
      %s464 = sshll.u32 [#allocation9], 4
      %s465 = int_to_ptr.vmem [resolvable:$true] %s464
      %470 = dma.vmem_to_hbm [thread:$0]  %s465, 256, %s5, [#allocation5], 128, 128, 8
    $region41: #{tpu_custom_call.1} parent=1 // pred_fallthru
      _
    // Predicated region
    $region42: #{tpu_custom_call.1} parent=1 // pred_check
      _
    $region43: #{tpu_custom_call.1} parent=1 // pred_check_branch
      %472 = sbr.rel (0) target = $region45
    $region44: #{tpu_custom_call.1} parent=1 // pred_region
      %473 = dma.done [#allocation5], 256
    $region45: #{tpu_custom_call.1} parent=1 // pred_fallthru
      _
    %474 = vsyncpa [#allocation4], 1
    %475 = vsyncpa [#allocation7], 1
    %476 = vsyncpa [#allocation5], 1

// kernel: tpu_custom_call.1
$region0: #{tpu_custom_call.1}
  #allocation0 [shape = 'u32[]', space=smem, size = 0x4, offset = 0x4, fixed_abs, tag = 'smem constant byte address 0x4 - core index']
  #allocation1 [shape = 'u32[144,128]{1,0:T(1,128)}', space=vmem, size = 0x12000, scoped, tag = 'internal scratch']
  #allocation2 [shape = 'bf16[16,128]{1,0:T(16,128)(2,1)}', space=vmem, size = 0x1000, scoped, tag = 'scratch operand']
  %s0 = inlined_call_operand.hbm [shape: bf16[16,256], index: 0, kind: input, shape index: {}]
  %s1 = inlined_call_operand.hbm [shape: bf16[256,128], index: 1, kind: input, shape index: {}]
  %s2 = inlined_call_operand.vmem [shape: f32[1,128], index: 2, kind: input, shape index: {}]
  %s3 = inlined_call_operand.hbm [shape: bf16[128,256], index: 3, kind: input, shape index: {}]
  %s4 = inlined_call_operand.vmem [shape: f32[1,256], index: 4, kind: input, shape index: {}]
  %s5 = inlined_call_operand.hbm [shape: bf16[16,256], index: 5, kind: output, shape index: {}]
  %s6 = sld [smem:[#allocation0]]
  $region46: #{tpu_custom_call.1} parent=0
    _
  %s8 = ssub.s32 1, %s6
  %s9 = scalar_select 0, %s8, %s6
  $region1: #{tpu_custom_call.1} parent=0
    #allocation3 [shape = 'u8[8192]{0}', space=vmem, size = 0x2000, scoped, tag = 'input window, operand 0, single buffered']
    #allocation4 [shape = 's32[1]{0}', space=sflag, size = 0x4, scoped, tag = 'scoped memory for tpu_custom_call.1']
    #allocation5 [shape = 's32[1]{0}', space=sflag, size = 0x4, scoped, tag = 'scoped memory for tpu_custom_call.1']
    #allocation6 [shape = 'u8[65536]{0}', space=vmem, size = 0x10000, scoped, tag = 'input window, operand 1, single buffered']
    #allocation7 [shape = 's32[1]{0}', space=sflag, size = 0x4, scoped, tag = 'scoped memory for tpu_custom_call.1']
    #allocation8 [shape = 'u8[65536]{0}', space=vmem, size = 0x10000, scoped, tag = 'input window, operand 3, single buffered']
    #allocation9 [shape = 'u8[8192]{0}', space=vmem, size = 0x2000, scoped, tag = 'output window, operand 0, single buffered']
    %10 = vsyncpa [#allocation4], 0
    %11 = vsyncpa [#allocation7], 0
    %12 = vsyncpa [#allocation5], 0
    // Predicated region
    $region2: #{tpu_custom_call.1} parent=1 // pred_check
      _
    $region3: #{tpu_custom_call.1} parent=1 // pred_check_branch
      %14 = sbr.rel (0) target = $region5
    $region4: #{tpu_custom_call.1} parent=1 // pred_region
      %s16 = ssub.s32 256, 256
      %17 = vsyncadd [#allocation4], %s16
      %s18 = sshll.u32 [#allocation3], 4
      %s19 = int_to_ptr.vmem [resolvable:$true] %s18
      %24 = dma.hbm_to_vmem [thread:$0]  %s0, 256, %s19, [#allocation4], 128, 128, 8
    $region5: #{tpu_custom_call.1} parent=1 // pred_fallthru
      _
    // Predicated region
    $region6: #{tpu_custom_call.1} parent=1 // pred_check
      _
    $region7: #{tpu_custom_call.1} parent=1 // pred_check_branch
      %26 = sbr.rel (0) target = $region9
    $region8: #{tpu_custom_call.1} parent=1 // pred_region
      %s28 = ssub.s32 2048, 2048
      %29 = vsyncadd [#allocation7], %s28
      %s30 = sshll.u32 [#allocation6], 4
      %s31 = int_to_ptr.vmem [resolvable:$true] %s30
      %36 = dma.hbm_to_vmem [thread:$0]  %s1, 2048, %s31, [#allocation7], 64, 64, 4
    $region9: #{tpu_custom_call.1} parent=1 // pred_fallthru
      _
    // Predicated region
    $region10: #{tpu_custom_call.1} parent=1 // pred_check
      _
    $region11: #{tpu_custom_call.1} parent=1 // pred_check_branch
      %38 = sbr.rel (0) target = $region13
    $region12: #{tpu_custom_call.1} parent=1 // pred_region
      _
    $region13: #{tpu_custom_call.1} parent=1 // pred_fallthru
      _
    // Predicated region
    $region14: #{tpu_custom_call.1} parent=1 // pred_check
      _
    $region15: #{tpu_custom_call.1} parent=1 // pred_check_branch
      %40 = sbr.rel (0) target = $region17
    $region16: #{tpu_custom_call.1} parent=1 // pred_region
      %s42 = ssub.s32 2048, 2048
      %43 = vsyncadd [#allocation7], %s42
      %s44 = sshll.u32 [#allocation8], 4
      %s45 = int_to_ptr.vmem [resolvable:$true] %s44
      %50 = dma.hbm_to_vmem [thread:$0]  %s3, 2048, %s45, [#allocation7], 128, 128, 8
    $region17: #{tpu_custom_call.1} parent=1 // pred_fallthru
      _
    // Predicated region
    $region18: #{tpu_custom_call.1} parent=1 // pred_check
      _
    $region19: #{tpu_custom_call.1} parent=1 // pred_check_branch
      %52 = sbr.rel (0) target = $region21
    $region20: #{tpu_custom_call.1} parent=1 // pred_region
      _
    $region21: #{tpu_custom_call.1} parent=1 // pred_fallthru
      _
    // Predicated region
    $region22: #{tpu_custom_call.1} parent=1 // pred_check
      _
    $region23: #{tpu_custom_call.1} parent=1 // pred_check_branch
      %54 = sbr.rel (0) target = $region25
    $region24: #{tpu_custom_call.1} parent=1 // pred_region
      %55 = dma.done [#allocation4], 256
    $region25: #{tpu_custom_call.1} parent=1 // pred_fallthru
      _
    // Predicated region
    $region26: #{tpu_custom_call.1} parent=1 // pred_check
      _
    $region27: #{tpu_custom_call.1} parent=1 // pred_check_branch
      %57 = sbr.rel (0) target = $region29
    $region28: #{tpu_custom_call.1} parent=1 // pred_region
      %58 = dma.done [#allocation7], 2048
    $region29: #{tpu_custom_call.1} parent=1 // pred_fallthru
      _
    // Predicated region
    $region30: #{tpu_custom_call.1} parent=1 // pred_check
      _
    $region31: #{tpu_custom_call.1} parent=1 // pred_check_branch
      %60 = sbr.rel (0) target = $region33
    $region32: #{tpu_custom_call.1} parent=1 // pred_region
      %61 = dma.done [#allocation7], 2048
    $region33: #{tpu_custom_call.1} parent=1 // pred_fallthru
      _
    %p63 = scmp.eq.s32.totalorder 0, 0
    // Predicated region
    $region34: #{tpu_custom_call.1} parent=1 // pred_check
      %p64 = pneg %p63
    $region35: #{tpu_custom_call.1} parent=1 // pred_check_branch
      %66 = sbr.rel (%p64) target = $region37
    $region36: #{tpu_custom_call.1} parent=1 // pred_region
      %v67 = vld [vmem:[#allocation3] sm:$0xff]
      %v68 = vld [vmem:[#allocation3 + $0x8] sm:$0xff]
      %v69 = vld [vmem:[#allocation6] sm:$0xf]
      %v70 = vld [vmem:[#allocation6 + $0x4] sm:$0xf]
      %v71 = vld [vmem:[#allocation6 + $0x8] sm:$0xf]
      %v72 = vld [vmem:[#allocation6 + $0xc] sm:$0xf]
      %v73 = vld [vmem:[#allocation6 + $0x10] sm:$0xf]
      %v74 = vld [vmem:[#allocation6 + $0x14] sm:$0xf]
      %v75 = vld [vmem:[#allocation6 + $0x18] sm:$0xf]
      %v76 = vld [vmem:[#allocation6 + $0x1c] sm:$0xf]
      %v77 = vld [vmem:[#allocation6 + $0x20] sm:$0xf]
      %v78 = vld [vmem:[#allocation6 + $0x24] sm:$0xf]
      %v79 = vld [vmem:[#allocation6 + $0x28] sm:$0xf]
      %v80 = vld [vmem:[#allocation6 + $0x2c] sm:$0xf]
      %v81 = vld [vmem:[#allocation6 + $0x30] sm:$0xf]
      %v82 = vld [vmem:[#allocation6 + $0x34] sm:$0xf]
      %v83 = vld [vmem:[#allocation6 + $0x38] sm:$0xf]
      %v84 = vld [vmem:[#allocation6 + $0x3c] sm:$0xf]
      %v85 = vld [vmem:[#allocation6 + $0x40] sm:$0xf]
      %v86 = vld [vmem:[#allocation6 + $0x44] sm:$0xf]
      %v87 = vld [vmem:[#allocation6 + $0x48] sm:$0xf]
      %v88 = vld [vmem:[#allocation6 + $0x4c] sm:$0xf]
      %v89 = vld [vmem:[#allocation6 + $0x50] sm:$0xf]
      %v90 = vld [vmem:[#allocation6 + $0x54] sm:$0xf]
      %v91 = vld [vmem:[#allocation6 + $0x58] sm:$0xf]
      %v92 = vld [vmem:[#allocation6 + $0x5c] sm:$0xf]
      %v93 = vld [vmem:[#allocation6 + $0x60] sm:$0xf]
      %v94 = vld [vmem:[#allocation6 + $0x64] sm:$0xf]
      %v95 = vld [vmem:[#allocation6 + $0x68] sm:$0xf]
      %v96 = vld [vmem:[#allocation6 + $0x6c] sm:$0xf]
      %v97 = vld [vmem:[#allocation6 + $0x70] sm:$0xf]
      %v98 = vld [vmem:[#allocation6 + $0x74] sm:$0xf]
      %v99 = vld [vmem:[#allocation6 + $0x78] sm:$0xf]
      %v100 = vld [vmem:[#allocation6 + $0x7c] sm:$0xf]
      %v101 = vld [vmem:[%s2] sm:$0x1]
      %v103 = vlaneseq
      %v104 = vshrl.u32 %v103, 7
      %v105 = vsub.s32 0, %v104
      %v106 = vrot.slane %v101, %v105
      %v110 = vunpack.c.l.b16 %v67
      %v111 = vunpack.c.h.b16 %v67
      %v112 = vunpack.c.l.b16 %v68
      %v113 = vunpack.c.h.b16 %v68
      %v114 = vpack.c.b16 %v112, %v110
      %v115 = vpack.c.b16 %v113, %v111
      %v150 = vunpack.c.l.b16 %v69
      %v151 = vunpack.c.l.b16 %v70
      %v152 = vunpack.c.l.b16 %v71
      %v153 = vunpack.c.l.b16 %v72
      %v154 = vunpack.c.l.b16 %v73
      %v155 = vunpack.c.l.b16 %v74
      %v156 = vunpack.c.l.b16 %v75
      %v157 = vunpack.c.l.b16 %v76
      %v158 = vunpack.c.l.b16 %v77
      %v159 = vunpack.c.l.b16 %v78
      %v160 = vunpack.c.l.b16 %v79
      %v161 = vunpack.c.l.b16 %v80
      %v162 = vunpack.c.l.b16 %v81
      %v163 = vunpack.c.l.b16 %v82
      %v164 = vunpack.c.l.b16 %v83
      %v165 = vunpack.c.l.b16 %v84
      %v166 = vunpack.c.l.b16 %v85
      %v167 = vunpack.c.l.b16 %v86
      %v168 = vunpack.c.l.b16 %v87
      %v169 = vunpack.c.l.b16 %v88
      %v170 = vunpack.c.l.b16 %v89
      %v171 = vunpack.c.l.b16 %v90
      %v172 = vunpack.c.l.b16 %v91
      %v173 = vunpack.c.l.b16 %v92
      %v174 = vunpack.c.l.b16 %v93
      %v175 = vunpack.c.l.b16 %v94
      %v176 = vunpack.c.l.b16 %v95
      %v177 = vunpack.c.l.b16 %v96
      %v178 = vunpack.c.l.b16 %v97
      %v179 = vunpack.c.l.b16 %v98
      %v180 = vunpack.c.l.b16 %v99
      %v181 = vunpack.c.l.b16 %v100
      %v182 = vpack.c.b16 %v151, %v150
      %v183 = vpack.c.b16 %v153, %v152
      %v184 = vpack.c.b16 %v155, %v154
      %v185 = vpack.c.b16 %v157, %v156
      %v186 = vpack.c.b16 %v159, %v158
      %v187 = vpack.c.b16 %v161, %v160
      %v188 = vpack.c.b16 %v163, %v162
      %v189 = vpack.c.b16 %v165, %v164
      %v190 = vpack.c.b16 %v167, %v166
      %v191 = vpack.c.b16 %v169, %v168
      %v192 = vpack.c.b16 %v171, %v170
      %v193 = vpack.c.b16 %v173, %v172
      %v194 = vpack.c.b16 %v175, %v174
      %v195 = vpack.c.b16 %v177, %v176
      %v196 = vpack.c.b16 %v179, %v178
      %v197 = vpack.c.b16 %v181, %v180
      %214 = vmatprep.subr.bf16.mxu0 0
      %215 = vmatpush1.bf16.msra.mxu0 %v182
      %216 = vmatprep.subr.bf16.mxu0 0
      %217 = vmatpush1.bf16.msra.mxu0 %v183
      %218 = vmatprep.subr.bf16.mxu0 0
      %219 = vmatpush1.bf16.msra.mxu0 %v184
      %220 = vmatprep.subr.bf16.mxu0 0
      %221 = vmatpush1.bf16.msra.mxu0 %v185
      %222 = vmatprep.subr.bf16.mxu0 0
      %223 = vmatpush1.bf16.msra.mxu0 %v186
      %224 = vmatprep.subr.bf16.mxu0 0
      %225 = vmatpush1.bf16.msra.mxu0 %v187
      %226 = vmatprep.subr.bf16.mxu0 0
      %227 = vmatpush1.bf16.msra.mxu0 %v188
      %228 = vmatprep.subr.bf16.mxu0 0
      %229 = vmatpush1.bf16.msra.mxu0 %v189
      %230 = vmatprep.subr.bf16.mxu0 0
      %231 = vmatpush1.bf16.msra.mxu0 %v190
      %232 = vmatprep.subr.bf16.mxu0 0
      %233 = vmatpush1.bf16.msra.mxu0 %v191
      %234 = vmatprep.subr.bf16.mxu0 0
      %235 = vmatpush1.bf16.msra.mxu0 %v192
      %236 = vmatprep.subr.bf16.mxu0 0
      %237 = vmatpush1.bf16.msra.mxu0 %v193
      %238 = vmatprep.subr.bf16.mxu0 0
      %239 = vmatpush1.bf16.msra.mxu0 %v194
      %240 = vmatprep.subr.bf16.mxu0 0
      %241 = vmatpush1.bf16.msra.mxu0 %v195
      %242 = vmatprep.subr.bf16.mxu0 0
      %243 = vmatpush1.bf16.msra.mxu0 %v196
      %244 = vmatprep.subr.bf16.mxu0 0
      %245 = vmatpush1.bf16.msra.mxu0 %v197
      %246 = vmatprep.mubr.bf16.mxu0 %v115
      %247 = vmatmul.mubr.bf16.gmra.mrb[0].mxu0 %v114
      %v248 = vpop.f32.mrb[0].mxu0
      %v249 = vadd.f32 %v106, %v248
      %v250 = vpop.f32.mrb[0].mxu0
      %v251 = vpop.f32.mrb[0].mxu0
      %v252 = vadd.f32 %v106, %v251
      %v253 = vpop.f32.mrb[0].mxu0
      %254 = vdwg.mxu0
      %v255 = vsub.f32 0.0, %v249
      %v256 = vsub.f32 0.0, %v252
      %v257 = vmul.f32 %v255, 1.442695
      %v258 = vpow.pop %v257
      %v259 = vmul.f32 %v256, 1.442695
      %v260 = vpow.pop %v259
      %v261 = vadd.f32 %v258, 1.0
      %v262 = vadd.f32 %v260, 1.0
      %v263 = vrcp.pop %v261
      %v264 = vmul.f32 1.0, %v263
      %v265 = vrcp.pop %v262
      %v266 = vmul.f32 1.0, %v265
      %v267 = vpack.c.bf16 %v266, %v264
      %268 = vst [vmem:[#allocation2] sm:$0xff] %v267
    $region37: #{tpu_custom_call.1} parent=1 // pred_fallthru
      _
    %v269 = vld [vmem:[#allocation2] sm:$0xff]
    %v270 = vld [vmem:[#allocation8] sm:$0xff]
    %v271 = vld [vmem:[#allocation8 + $0x8] sm:$0xff]
    %v272 = vld [vmem:[#allocation8 + $0x10] sm:$0xff]
    %v273 = vld [vmem:[#allocation8 + $0x18] sm:$0xff]
    %v274 = vld [vmem:[#allocation8 + $0x20] sm:$0xff]
    %v275 = vld [vmem:[#allocation8 + $0x28] sm:$0xff]
    %v276 = vld [vmem:[#allocation8 + $0x30] sm:$0xff]
    %v277 = vld [vmem:[#allocation8 + $0x38] sm:$0xff]
    %v278 = vld [vmem:[#allocation8 + $0x40] sm:$0xff]
    %v279 = vld [vmem:[#allocation8 + $0x48] sm:$0xff]
    %v280 = vld [vmem:[#allocation8 + $0x50] sm:$0xff]
    %v281 = vld [vmem:[#allocation8 + $0x58] sm:$0xff]
    %v282 = vld [vmem:[#allocation8 + $0x60] sm:$0xff]
    %v283 = vld [vmem:[#allocation8 + $0x68] sm:$0xff]
    %v284 = vld [vmem:[#allocation8 + $0x70] sm:$0xff]
    %v285 = vld [vmem:[#allocation8 + $0x78] sm:$0xff]
    %v286 = vld [vmem:[%s4] sm:$0x3]
    %v288 = vlaneseq
    %v289 = vshrl.u32 %v288, 7
    %v290 = vsub.s32 0, %v289
    %v291 = vrot.slane %v286, %v290
    %v292 = vlaneseq
    %v293 = vshrl.u32 %v292, 7
    %v294 = vsub.s32 1, %v293
    %v295 = vrot.slane %v286, %v294
    %v314 = vunpack.c.l.b16 %v270
    %v315 = vunpack.c.h.b16 %v270
    %v316 = vunpack.c.l.b16 %v271
    %v317 = vunpack.c.h.b16 %v271
    %v318 = vunpack.c.l.b16 %v272
    %v319 = vunpack.c.h.b16 %v272
    %v320 = vunpack.c.l.b16 %v273
    %v321 = vunpack.c.h.b16 %v273
    %v322 = vunpack.c.l.b16 %v274
    %v323 = vunpack.c.h.b16 %v274
    %v324 = vunpack.c.l.b16 %v275
    %v325 = vunpack.c.h.b16 %v275
    %v326 = vunpack.c.l.b16 %v276
    %v327 = vunpack.c.h.b16 %v276
    %v328 = vunpack.c.l.b16 %v277
    %v329 = vunpack.c.h.b16 %v277
    %v330 = vunpack.c.l.b16 %v278
    %v331 = vunpack.c.h.b16 %v278
    %v332 = vunpack.c.l.b16 %v279
    %v333 = vunpack.c.h.b16 %v279
    %v334 = vunpack.c.l.b16 %v280
    %v335 = vunpack.c.h.b16 %v280
    %v336 = vunpack.c.l.b16 %v281
    %v337 = vunpack.c.h.b16 %v281
    %v338 = vunpack.c.l.b16 %v282
    %v339 = vunpack.c.h.b16 %v282
    %v340 = vunpack.c.l.b16 %v283
    %v341 = vunpack.c.h.b16 %v283
    %v342 = vunpack.c.l.b16 %v284
    %v343 = vunpack.c.h.b16 %v284
    %v344 = vunpack.c.l.b16 %v285
    %v345 = vunpack.c.h.b16 %v285
    %v346 = vpack.c.b16 %v316, %v314
    %v347 = vpack.c.b16 %v317, %v315
    %v348 = vpack.c.b16 %v320, %v318
    %v349 = vpack.c.b16 %v321, %v319
    %v350 = vpack.c.b16 %v324, %v322
    %v351 = vpack.c.b16 %v325, %v323
    %v352 = vpack.c.b16 %v328, %v326
    %v353 = vpack.c.b16 %v329, %v327
    %v354 = vpack.c.b16 %v332, %v330
    %v355 = vpack.c.b16 %v333, %v331
    %v356 = vpack.c.b16 %v336, %v334
    %v357 = vpack.c.b16 %v337, %v335
    %v358 = vpack.c.b16 %v340, %v338
    %v359 = vpack.c.b16 %v341, %v339
    %v360 = vpack.c.b16 %v344, %v342
    %v361 = vpack.c.b16 %v345, %v343
    %378 = vmatprep.subr.bf16.mxu0 %v347
    %379 = vmatpush1.bf16.msra.mxu0 %v346
    %380 = vmatprep.subr.bf16.mxu0 %v349
    %381 = vmatpush1.bf16.msra.mxu0 %v348
    %382 = vmatprep.subr.bf16.mxu0 %v351
    %383 = vmatpush1.bf16.msra.mxu0 %v350
    %384 = vmatprep.subr.bf16.mxu0 %v353
    %385 = vmatpush1.bf16.msra.mxu0 %v352
    %386 = vmatprep.subr.bf16.mxu0 %v355
    %387 = vmatpush1.bf16.msra.mxu0 %v354
    %388 = vmatprep.subr.bf16.mxu0 %v357
    %389 = vmatpush1.bf16.msra.mxu0 %v356
    %390 = vmatprep.subr.bf16.mxu0 %v359
    %391 = vmatpush1.bf16.msra.mxu0 %v358
    %392 = vmatprep.subr.bf16.mxu0 %v361
    %393 = vmatpush1.bf16.msra.mxu0 %v360
    %394 = vmatprep.subr.bf16.mxu0 0
    %395 = vmatpush1.bf16.msra.mxu0 0
    %396 = vmatprep.subr.bf16.mxu0 0
    %397 = vmatpush1.bf16.msra.mxu0 0
    %398 = vmatprep.subr.bf16.mxu0 0
    %399 = vmatpush1.bf16.msra.mxu0 0
    %400 = vmatprep.subr.bf16.mxu0 0
    %401 = vmatpush1.bf16.msra.mxu0 0
    %402 = vmatprep.subr.bf16.mxu0 0
    %403 = vmatpush1.bf16.msra.mxu0 0
    %404 = vmatprep.subr.bf16.mxu0 0
    %405 = vmatpush1.bf16.msra.mxu0 0
    %406 = vmatprep.subr.bf16.mxu0 0
    %407 = vmatpush1.bf16.msra.mxu0 0
    %408 = vmatprep.subr.bf16.mxu0 0
    %409 = vmatpush1.bf16.msra.mxu0 0
    %410 = vmatprep.mubr.bf16.mxu0 0
    %411 = vmatmul.mubr.bf16.gmra.mrb[0].mxu0 %v269
    %v412 = vpop.f32.mrb[0].mxu0
    %v413 = vadd.f32 %v291, %v412
    %v414 = vpop.f32.mrb[0].mxu0
    %v415 = vadd.f32 %v295, %v414
    %v416 = vpop.f32.mrb[0].mxu0
    %v417 = vadd.f32 %v291, %v416
    %v418 = vpop.f32.mrb[0].mxu0
    %v419 = vadd.f32 %v295, %v418
    %420 = vdwg.mxu0
    %v421 = vsub.f32 0.0, %v413
    %v422 = vsub.f32 0.0, %v415
    %v423 = vsub.f32 0.0, %v417
    %v424 = vsub.f32 0.0, %v419
    %v425 = vmul.f32 %v421, 1.442695
    %v426 = vpow.pop %v425
    %v427 = vmul.f32 %v422, 1.442695
    %v428 = vpow.pop %v427
    %v429 = vmul.f32 %v423, 1.442695
    %v430 = vpow.pop %v429
    %v431 = vmul.f32 %v424, 1.442695
    %v432 = vpow.pop %v431
    %v433 = vadd.f32 %v426, 1.0
    %v434 = vadd.f32 %v428, 1.0
    %v435 = vadd.f32 %v430, 1.0
    %v436 = vadd.f32 %v432, 1.0
    %v437 = vrcp.pop %v433
    %v438 = vmul.f32 1.0, %v437
    %v439 = vrcp.pop %v434
    %v440 = vmul.f32 1.0, %v439
    %v441 = vrcp.pop %v435
    %v442 = vmul.f32 1.0, %v441
    %v443 = vrcp.pop %v436
    %v444 = vmul.f32 1.0, %v443
    %v445 = vpack.c.bf16 %v442, %v438
    %v446 = vpack.c.bf16 %v444, %v440
    %v449 = vunpack.c.l.b16 %v445
    %v450 = vunpack.c.l.b16 %v446
    %v451 = vunpack.c.h.b16 %v445
    %v452 = vunpack.c.h.b16 %v446
    %v453 = vpack.c.b16 %v450, %v449
    %v454 = vpack.c.b16 %v452, %v451
    %457 = vst [vmem:[#allocation9] sm:$0xff] %v453
    %458 = vst [vmem:[#allocation9 + $0x8] sm:$0xff] %v454
    // Predicated region
    $region38: #{tpu_custom_call.1} parent=1 // pred_check
      _
    $region39: #{tpu_custom_call.1} parent=1 // pred_check_branch
      %460 = sbr.rel (0) target = $region41
    $region40: #{tpu_custom_call.1} parent=1 // pred_region
      %s462 = ssub.s32 256, 256
      %463 = vsyncadd [#allocation5], %s462
      %s464 = sshll.u32 [#allocation9], 4
      %s465 = int_to_ptr.vmem [resolvable:$true] %s464
      %470 = dma.vmem_to_hbm [thread:$0]  %s465, 256, %s5, [#allocation5], 128, 128, 8
    $region41: #{tpu_custom_call.1} parent=1 // pred_fallthru
      _
    // Predicated region
    $region42: #{tpu_custom_call.1} parent=1 // pred_check
      _
    $region43: #{tpu_custom_call.1} parent=1 // pred_check_branch
      %472 = sbr.rel (0) target = $region45
    $region44: #{tpu_custom_call.1} parent=1 // pred_region
      %473 = dma.done [#allocation5], 256
    $region45: #{tpu_custom_call.1} parent=1 // pred_fallthru
      _
    %474 = vsyncpa [#allocation4], 1
    %475 = vsyncpa [#allocation7], 1
    %476 = vsyncpa [#allocation5], 1

</llo_original>
